<compile_context>
chip_gen: v7x
topology: tpu7x:2x2x1
jax: 0.10.0
libtpu: 0.0.40
codegen_flags: <defaults>
</compile_context>

<pallas_src>
import numpy as np
import jax
import jax.numpy as jnp
from jax import lax
from jax.experimental import pallas as pl
from jax.experimental.pallas import tpu as pltpu


# ----------------------------- Pallas kernel --------------------------------
def gnn_kernel(x_in_ref, e_in_ref, src_ref, dst_ref, meta_ref, P_ref,
               wpre_ref, bpre_ref, wpe_ref, bpe_ref,
               w1_ref, b1_ref, w2_ref, b2_ref, gamma_ref, beta_ref,
               out_ref, x_buf, xb_buf, h_buf, eh_buf):
    f32, bf16 = jnp.float32, jnp.bfloat16
    Np, Hp = x_buf.shape
    nblk, EBLK = dst_ref.shape
    n_real = meta_ref[0]                       # real node rows (rest is padding)

    # pre_mp / pre_edge_feature: bf16 MXU operands, f32 accumulation.
    x_buf[...] = (jnp.dot(x_in_ref[...].astype(bf16), wpre_ref[...],
                          preferred_element_type=f32) + bpre_ref[...])
    eh_buf[...] = (jnp.dot(e_in_ref[...].astype(bf16), wpe_ref[...],
                           preferred_element_type=f32) + bpe_ref[...]).astype(bf16)

    # Masks over real node rows only (padded rows never enter stats / pooling).
    row_mask = (lax.broadcasted_iota(jnp.int32, (Np, 1), 0) < n_real).astype(f32)
    inv_n = 1.0 / jnp.maximum(n_real, 1).astype(f32)
    r_vec = (lax.broadcasted_iota(jnp.int32, (1, Np), 1) < n_real).astype(f32) * inv_n
    lane_iota = lax.broadcasted_iota(jnp.int32, (EBLK, Np), 1)   # src one-hot build
    sub_iota = lax.broadcasted_iota(jnp.int32, (Np, EBLK), 0)    # dst one-hot build

    num_layers = w1_ref.shape[0]

    def layer_body(l, carry):
        xb_buf[...] = x_buf[...].astype(bf16)      # gather operand, cast once/layer
        h_buf[...] = x_buf[...]                    # h = x + aggr accumulates here

        # --- message passing on the MXU: aggr[dst] += relu(x[src] + eh) -------
        def edge_block(b, c):
            off = pl.multiple_of(b * EBLK, 8)
            src_col = src_ref[pl.ds(off, EBLK), :]                       # (EBLK,1)
            dst_row = dst_ref[pl.ds(b, 1), :]                            # (1,EBLK)
            # Padded edges have src/dst = -1 -> all-zero one-hot -> no contribution.
            onehot_src = (lane_iota == src_col).astype(f32).astype(bf16)   # (EBLK,Np)
            onehot_dst_t = (sub_iota == dst_row).astype(f32).astype(bf16)  # (Np,EBLK)
            x_src = jnp.dot(onehot_src, xb_buf[...],
                            preferred_element_type=f32)                  # gather
            eh_blk = eh_buf[pl.ds(off, EBLK), :].astype(f32)
            msg = jnp.maximum(x_src + eh_blk, 0.0).astype(bf16)
            h_buf[...] = h_buf[...] + jnp.dot(onehot_dst_t, msg,
                                              preferred_element_type=f32)  # scatter
            return c

        lax.fori_loop(0, nblk, edge_block, 0)

        # --- nn = Linear -> LeakyReLU(0.01) -> Linear (bf16 MXU operands) ------
        h = jnp.dot(h_buf[...].astype(bf16), w1_ref[l],
                    preferred_element_type=f32) + b1_ref[l]
        h = jnp.maximum(h, 0.01 * h)
        h = jnp.dot(h.astype(bf16), w2_ref[l],
                    preferred_element_type=f32) + b2_ref[l]

        # --- BatchNorm1d (training batch stats), two-pass, reductions on MXU ---
        mean = jnp.dot(r_vec, h, preferred_element_type=f32)        # (1,Hp)
        d = h - mean
        var = jnp.dot(r_vec, d * d, preferred_element_type=f32)     # (1,Hp) biased
        scale = gamma_ref[l] * lax.rsqrt(var + 1e-5)
        # TODO(synk): dropout with p>0 not implemented (reference default p=0 -> identity)
        x_buf[...] = (d * scale + beta_ref[l]) * row_mask            # pads stay 0
        return carry

    lax.fori_loop(0, num_layers, layer_body, 0)

    # global mean pool (P has 1/count on real rows, 0 on pads) + L2 normalize.
    pooled = jnp.dot(P_ref[...], x_buf[...], preferred_element_type=f32)
    sumsq = jnp.sum(pooled * pooled, axis=1, keepdims=True)
    out_ref[...] = pooled * lax.rsqrt(jnp.maximum(sumsq, 1e-24))
    # TODO(synk): single-TensorCore kernel; v7x dual-core node-tile grid with a
    # cross-core aggr/BN-stat reduction not implemented.


# --------------------------- host-side wrapper -------------------------------
def _round_up(x, m):
    return (x + m - 1) // m * m


def _pad_params_to_lane(params, Hp):
    """Zero-pad hidden axes to Hp lanes; store weight matrices in bf16."""
    (wpre, bpre, wpe, bpe, w1, b1, w2, b2, gamma, beta) = params
    H = wpre.shape[1]
    ph = Hp - H
    bf16 = jnp.bfloat16

    def pc(a):      # pad last dim only
        return jnp.pad(a, [(0, 0)] * (a.ndim - 1) + [(0, ph)])

    def pcc(a):     # pad last two dims (square hidden x hidden weights)
        return jnp.pad(a, [(0, 0)] * (a.ndim - 2) + [(0, ph), (0, ph)])

    # gamma/beta pads are zero so padded hidden columns stay exactly zero.
    return (pc(wpre).astype(bf16), pc(bpre), pc(wpe).astype(bf16), pc(bpe),
            pcc(w1).astype(bf16), pc(b1), pcc(w2).astype(bf16), pc(b2),
            pc(gamma), pc(beta))


def _padded_bytes(shape, itemsize):
    """Layout-padded VMEM footprint estimate (sublane->8, lane->128)."""
    shape = tuple(int(s) for s in shape)
    if len(shape) <= 1:
        n = shape[0] if shape else 1
        return _round_up(n * itemsize, 512)
    lead = int(np.prod(shape[:-2], dtype=np.int64)) if len(shape) > 2 else 1
    return lead * _round_up(shape[-2], 8) * _round_up(shape[-1], 128) * itemsize


def gnn_graph_extractor(node_b, ef_b, src, dst, batch_idx, n_graphs, params):
    """node_b:(N,node_dim) f32, ef_b:(E,edge_dim) f32, src/dst:(E,) int,
    batch_idx:(N,) int graph id.  Returns (n_graphs, hidden) f32."""
    H = int(params[0].shape[1])
    Hp = _round_up(H, 128)                            # lane-dense hidden dim
    N, E = int(node_b.shape[0]), int(ef_b.shape[0])
    Np = _round_up(max(N, 1), 8)                      # sublane-aligned node rows
    EBLK = 128 if E >= 128 else _round_up(max(E, 1), 8)
    Ep = _round_up(max(E, 1), EBLK)                   # static edge-block count
    nblk = Ep // EBLK

    x_in = np.zeros((Np, node_b.shape[1]), np.float32); x_in[:N] = node_b
    e_in = np.zeros((Ep, ef_b.shape[1]), np.float32); e_in[:E] = ef_b
    # Padded edges point at node -1: zero one-hot -> gathered as zeros, dropped
    # by the scatter matmul (static trip count, no dynamic e_real gate).
    src_col = np.full((Ep, 1), -1, np.int32); src_col[:E, 0] = np.asarray(src, np.int32)
    dst_row = np.full((Ep,), -1, np.int32); dst_row[:E] = np.asarray(dst, np.int32)
    dst_row = dst_row.reshape(nblk, EBLK)
    meta = np.array([N], np.int32)

    # mean-pool weights (zero on pad rows; guard against zero-node graphs)
    P = np.zeros((n_graphs, Np), np.float32)
    for b in range(n_graphs):
        idx = np.nonzero(np.asarray(batch_idx) == b)[0]
        if len(idx):
            P[b, idx] = 1.0 / float(len(idx))

    pp = _pad_params_to_lane(params, Hp)
    L = int(pp[4].shape[0])
    node_dim, edge_dim = x_in.shape[1], e_in.shape[1]

    # --- VMEM budget: actual layout-padded working set + margin, clamped to chip.
    total = sum(_padded_bytes(a.shape, a.dtype.itemsize)
                for a in (x_in, e_in, src_col, dst_row, P))
    total += sum(_padded_bytes(p.shape, p.dtype.itemsize) for p in pp)
    total += _padded_bytes((n_graphs, Hp), 4)          # output
    total += 2 * _padded_bytes((Np, Hp), 4)            # x_buf, h_buf (f32)
    total += _padded_bytes((Np, Hp), 2)                # xb_buf (bf16)
    total += _padded_bytes((Ep, Hp), 2)                # eh_buf (bf16)
    try:
        vmem_cap = int(getattr(pltpu.get_tpu_info(), "vmem_capacity_bytes",
                               64 * 1024 * 1024))
    except Exception:
        vmem_cap = 64 * 1024 * 1024
    vmem_limit = int(min(max(int(total * 1.25) + (8 << 20), 16 << 20),
                         int(vmem_cap * 0.9)))

    flops = (2 * Np * node_dim * Hp + 2 * Ep * edge_dim * Hp
             + L * (4 * Ep * Np * Hp + 4 * Np * Hp * Hp + 16 * Np * Hp)
             + 2 * n_graphs * Np * Hp)
    cost = pl.CostEstimate(flops=int(flops),
                           transcendentals=int(L * Hp + n_graphs),
                           bytes_accessed=int(total))

    vmem_spec = pl.BlockSpec(memory_space=pltpu.MemorySpace.VMEM)
    smem_spec = pl.BlockSpec(memory_space=pltpu.MemorySpace.SMEM)
    in_specs = ([vmem_spec, vmem_spec, vmem_spec, vmem_spec, smem_spec, vmem_spec]
                + [vmem_spec] * 10)

    out = pl.pallas_call(
        gnn_kernel,
        out_shape=jax.ShapeDtypeStruct((n_graphs, Hp), jnp.float32),
        in_specs=in_specs,
        out_specs=vmem_spec,
        scratch_shapes=[pltpu.VMEM((Np, Hp), jnp.float32),    # x (running node feats)
                        pltpu.VMEM((Np, Hp), jnp.bfloat16),   # bf16 copy of x (gather)
                        pltpu.VMEM((Np, Hp), jnp.float32),    # h = x + aggr accumulator
                        pltpu.VMEM((Ep, Hp), jnp.bfloat16)],  # edge hidden feats (bf16)
        compiler_params=pltpu.CompilerParams(vmem_limit_bytes=vmem_limit),
        cost_estimate=cost,
    )(jnp.asarray(x_in), jnp.asarray(e_in), jnp.asarray(src_col), jnp.asarray(dst_row),
      jnp.asarray(meta), jnp.asarray(P), *pp)
    return out[:, :H]


# --------------------------- host-side glue ---------------------------------
def preprocess_graph_representation(node_feature, edge_index, edge_feature, lens):
    """numpy re-implementation of the reference preprocess (lens: (B,1,2) ints)."""
    B = node_feature.shape[0]
    n_nodes = [int(lens[i, 0, 0]) for i in range(B)]
    n_edges = [int(lens[i, 0, 1]) for i in range(B)]
    node_b = np.concatenate([node_feature[i][: n_nodes[i]] for i in range(B)], axis=0)
    offs = np.concatenate([[0], np.cumsum(n_nodes)[:-1]]).astype(np.int64)
    ei_b = np.concatenate(
        [edge_index[i][:, : n_edges[i]] + offs[i] for i in range(B)], axis=1
    ).astype(np.int64)
    ef_b = np.concatenate([edge_feature[i][: n_edges[i]] for i in range(B)], axis=0)
    batch_idx = np.concatenate([[i] * n_nodes[i] for i in range(B)]).astype(np.int64)
    return node_b, ei_b, ef_b, batch_idx


def init_params(key, node_dim, edge_dim, hidden, n_conv_layers):
    ks = jax.random.split(key, 8)
    s = 0.1
    wpre = s * jax.random.normal(ks[0], (node_dim, hidden), jnp.float32)
    bpre = s * jax.random.normal(ks[1], (1, hidden), jnp.float32)
    wpe = s * jax.random.normal(ks[2], (edge_dim, hidden), jnp.float32)
    bpe = s * jax.random.normal(ks[3], (1, hidden), jnp.float32)
    w1 = s * jax.random.normal(ks[4], (n_conv_layers, hidden, hidden), jnp.float32)
    b1 = s * jax.random.normal(ks[5], (n_conv_layers, 1, hidden), jnp.float32)
    w2 = s * jax.random.normal(ks[6], (n_conv_layers, hidden, hidden), jnp.float32)
    b2 = s * jax.random.normal(ks[7], (n_conv_layers, 1, hidden), jnp.float32)
    gamma = jnp.ones((n_conv_layers, 1, hidden), jnp.float32)   # BN init: weight=1
    beta = jnp.zeros((n_conv_layers, 1, hidden), jnp.float32)   # BN init: bias=0
    return (wpre, bpre, wpe, bpe, w1, b1, w2, b2, gamma, beta)


def reference_forward(node_b, ei_b, ef_b, batch_idx, n_graphs, params):
    """Independent pure-JAX reference (gather/scatter message passing).
    Operands are rounded to bf16 exactly where the kernel rounds them at MXU
    boundaries, so the comparison isolates implementation differences."""
    f32, bf16 = jnp.float32, jnp.bfloat16

    def mm(a, w):
        return jnp.dot(a.astype(bf16), w.astype(bf16), preferred_element_type=f32)

    (wpre, bpre, wpe, bpe, w1, b1, w2, b2, gamma, beta) = params
    x = mm(node_b, wpre) + bpre
    eh = (mm(ef_b, wpe) + bpe).astype(bf16).astype(f32)          # kernel stores eh bf16
    src, dst = ei_b[0], ei_b[1]
    for l in range(w1.shape[0]):
        xg = x.astype(bf16).astype(f32)                          # gather operand rounding
        msg = jnp.maximum(xg[src] + eh, 0.0).astype(bf16).astype(f32)   # scatter rounding
        aggr = jnp.zeros_like(x).at[dst].add(msg)
        h = x + aggr
        h = mm(h, w1[l]) + b1[l]
        h = jnp.maximum(h, 0.01 * h)
        h = mm(h, w2[l]) + b2[l]
        mean = h.mean(axis=0, keepdims=True)
        var = ((h - mean) ** 2).mean(axis=0, keepdims=True)      # biased, training mode
        x = (h - mean) * (gamma[l] * lax.rsqrt(var + 1e-5)) + beta[l]
    pooled = jnp.zeros((n_graphs, x.shape[1]), f32).at[batch_idx].add(x)
    counts = jnp.zeros((n_graphs, 1), f32).at[batch_idx].add(1.0)
    pooled = pooled / counts
    norm = jnp.sqrt((pooled ** 2).sum(axis=1, keepdims=True))
    return pooled / jnp.maximum(norm, 1e-12)


if __name__ == "__main__":
    # Small shapes consistent with the module's forward signature.
    B, max_nodes, max_edges = 2, 8, 12
    node_dim, edge_dim, hidden, num_layers = 8, 8, 32, 3
    n_conv_applied = num_layers - 1   # reference loop runs len(convs) - 1 times

    key = jax.random.PRNGKey(0)
    k1, k2, k3, kp = jax.random.split(key, 4)

    # Batched ragged graph observation, as the PyTorch module expects.
    node_feature = np.asarray(jax.random.normal(k1, (B, max_nodes, node_dim), jnp.float32))
    edge_feature = np.asarray(jax.random.normal(k2, (B, max_edges, edge_dim), jnp.float32))
    lens = np.array([[[6, 9]], [[8, 12]]], dtype=np.int32)              # (B, 1, 2)
    edge_index = np.zeros((B, 2, max_edges), dtype=np.int64)
    ei_rand = np.asarray(jax.random.randint(k3, (B, 2, max_edges), 0, max_nodes))
    for b in range(B):
        nn_b = int(lens[b, 0, 0])
        edge_index[b] = ei_rand[b] % nn_b                                # valid node ids per graph

    # Host-side preprocess (ragged concat / index offsets).
    node_b, ei_b, ef_b, batch_idx = preprocess_graph_representation(
        node_feature, edge_index, edge_feature, lens)

    params = init_params(kp, node_dim, edge_dim, hidden, n_conv_applied)

    out = gnn_graph_extractor(node_b.astype(np.float32), ef_b.astype(np.float32),
                              ei_b[0], ei_b[1], batch_idx, B, params)
    out = jax.block_until_ready(out)

    ref = reference_forward(jnp.asarray(node_b, jnp.float32), jnp.asarray(ei_b),
                            jnp.asarray(ef_b, jnp.float32), jnp.asarray(batch_idx),
                            B, params)
    np.testing.assert_allclose(np.asarray(out), np.asarray(ref), rtol=5e-3, atol=1e-3)

    print("KERNEL_OK")
</pallas_src>

<mosaic_0001>
module attributes {stable_mosaic.version = 11 : i64} {
  func.func @gnn_kernel(%arg0: memref<16x8xf32, #tpu.memory_space<vmem>>, %arg1: memref<24x8xf32, #tpu.memory_space<vmem>>, %arg2: memref<24x1xi32, #tpu.memory_space<vmem>>, %arg3: memref<1x24xi32, #tpu.memory_space<vmem>>, %arg4: memref<1xi32, #tpu.memory_space<smem>>, %arg5: memref<2x16xf32, #tpu.memory_space<vmem>>, %arg6: memref<8x128xbf16, #tpu.memory_space<vmem>>, %arg7: memref<1x128xf32, #tpu.memory_space<vmem>>, %arg8: memref<8x128xbf16, #tpu.memory_space<vmem>>, %arg9: memref<1x128xf32, #tpu.memory_space<vmem>>, %arg10: memref<2x128x128xbf16, #tpu.memory_space<vmem>>, %arg11: memref<2x1x128xf32, #tpu.memory_space<vmem>>, %arg12: memref<2x128x128xbf16, #tpu.memory_space<vmem>>, %arg13: memref<2x1x128xf32, #tpu.memory_space<vmem>>, %arg14: memref<2x1x128xf32, #tpu.memory_space<vmem>>, %arg15: memref<2x1x128xf32, #tpu.memory_space<vmem>>, %arg16: memref<2x128xf32, #tpu.memory_space<vmem>>, %arg17: memref<16x128xf32, #tpu.memory_space<vmem>>, %arg18: memref<16x128xbf16, #tpu.memory_space<vmem>>, %arg19: memref<16x128xf32, #tpu.memory_space<vmem>>, %arg20: memref<24x128xbf16, #tpu.memory_space<vmem>>) attributes {dimension_semantics = [], scalar_prefetch = 0 : i64, scratch_operands = 4 : i64, tpu.core_type = #tpu.core_type<tc>} {
    %c0 = arith.constant 0 : index
    %0 = memref.load %arg4[%c0] : memref<1xi32, #tpu.memory_space<smem>>
    %c0_0 = arith.constant 0 : index
    %c0_1 = arith.constant 0 : index
    %1 = vector.load %arg0[%c0_0, %c0_1] : memref<16x8xf32, #tpu.memory_space<vmem>>, vector<16x8xf32>
    %2 = arith.truncf %1 : vector<16x8xf32> to vector<16x8xbf16>
    %c0_2 = arith.constant 0 : index
    %c0_3 = arith.constant 0 : index
    %3 = vector.load %arg6[%c0_2, %c0_3] : memref<8x128xbf16, #tpu.memory_space<vmem>>, vector<8x128xbf16>
    %cst = arith.constant dense<0.000000e+00> : vector<16x128xf32>
    %4 = tpu.matmul %2, %3, %cst {dimension_numbers = #tpu.dot_dimension_numbers<[1], [0], [0], [1], [0, 0, 1, 1], [], []>} : vector<16x8xbf16>, vector<8x128xbf16>, vector<16x128xf32> -> vector<16x128xf32>
    %c0_4 = arith.constant 0 : index
    %c0_5 = arith.constant 0 : index
    %5 = vector.load %arg7[%c0_4, %c0_5] : memref<1x128xf32, #tpu.memory_space<vmem>>, vector<1x128xf32>
    %6 = vector.broadcast %5 : vector<1x128xf32> to vector<16x128xf32>
    %7 = arith.addf %4, %6 : vector<16x128xf32>
    %c0_6 = arith.constant 0 : index
    %c0_7 = arith.constant 0 : index
    %8 = vector.load %arg17[%c0_6, %c0_7] : memref<16x128xf32, #tpu.memory_space<vmem>>, vector<16x128xf32>
    tpu.vector_store %arg17[%c0_6, %c0_7], %7 {strides = array<i32>} : memref<16x128xf32, #tpu.memory_space<vmem>>, vector<16x128xf32>,
    %c0_8 = arith.constant 0 : index
    %c0_9 = arith.constant 0 : index
    %9 = vector.load %arg1[%c0_8, %c0_9] : memref<24x8xf32, #tpu.memory_space<vmem>>, vector<24x8xf32>
    %10 = arith.truncf %9 : vector<24x8xf32> to vector<24x8xbf16>
    %c0_10 = arith.constant 0 : index
    %c0_11 = arith.constant 0 : index
    %11 = vector.load %arg8[%c0_10, %c0_11] : memref<8x128xbf16, #tpu.memory_space<vmem>>, vector<8x128xbf16>
    %cst_12 = arith.constant dense<0.000000e+00> : vector<24x128xf32>
    %12 = tpu.matmul %10, %11, %cst_12 {dimension_numbers = #tpu.dot_dimension_numbers<[1], [0], [0], [1], [0, 0, 1, 1], [], []>} : vector<24x8xbf16>, vector<8x128xbf16>, vector<24x128xf32> -> vector<24x128xf32>
    %c0_13 = arith.constant 0 : index
    %c0_14 = arith.constant 0 : index
    %13 = vector.load %arg9[%c0_13, %c0_14] : memref<1x128xf32, #tpu.memory_space<vmem>>, vector<1x128xf32>
    %14 = vector.broadcast %13 : vector<1x128xf32> to vector<24x128xf32>
    %15 = arith.addf %12, %14 : vector<24x128xf32>
    %16 = arith.truncf %15 : vector<24x128xf32> to vector<24x128xbf16>
    %c0_15 = arith.constant 0 : index
    %c0_16 = arith.constant 0 : index
    %17 = vector.load %arg20[%c0_15, %c0_16] : memref<24x128xbf16, #tpu.memory_space<vmem>>, vector<24x128xbf16>
    tpu.vector_store %arg20[%c0_15, %c0_16], %16 {strides = array<i32>} : memref<24x128xbf16, #tpu.memory_space<vmem>>, vector<24x128xbf16>,
    %18 = tpu.iota {dimensions = array<i32: 0>} : vector<16x1xi32>
    %19 = vector.broadcast %0 : i32 to vector<16x1xi32>
    %20 = arith.cmpi slt, %18, %19 : vector<16x1xi32>
    %21 = arith.extui %20 : vector<16x1xi1> to vector<16x1xi32>
    %22 = arith.sitofp %21 : vector<16x1xi32> to vector<16x1xf32>
    %c1_i32 = arith.constant 1 : i32
    %23 = arith.maxsi %0, %c1_i32 : i32
    %24 = arith.sitofp %23 : i32 to f32
    %cst_17 = arith.constant 1.000000e+00 : f32
    %25 = arith.divf %cst_17, %24 : f32
    %26 = tpu.iota {dimensions = array<i32: 1>} : vector<1x16xi32>
    %27 = vector.broadcast %0 : i32 to vector<1x16xi32>
    %28 = arith.cmpi slt, %26, %27 : vector<1x16xi32>
    %29 = arith.extui %28 : vector<1x16xi1> to vector<1x16xi32>
    %30 = arith.sitofp %29 : vector<1x16xi32> to vector<1x16xf32>
    %31 = vector.broadcast %25 : f32 to vector<1x16xf32>
    %32 = arith.mulf %30, %31 : vector<1x16xf32>
    %33 = tpu.iota {dimensions = array<i32: 1>} : vector<24x16xi32>
    %34 = tpu.iota {dimensions = array<i32: 0>} : vector<16x24xi32>
    %c0_i32 = arith.constant 0 : i32
    %c2_i32 = arith.constant 2 : i32
    %35 = arith.addi %c0_i32, %c2_i32 : i32
    %c1_i32_18 = arith.constant 1 : i32
    scf.for %arg21 = %c0_i32 to %35 step %c1_i32_18  : i32 {
      %c0_29 = arith.constant 0 : index
      %c0_30 = arith.constant 0 : index
      %48 = vector.load %arg17[%c0_29, %c0_30] : memref<16x128xf32, #tpu.memory_space<vmem>>, vector<16x128xf32>
      %49 = arith.truncf %48 : vector<16x128xf32> to vector<16x128xbf16>
      %c0_31 = arith.constant 0 : index
      %c0_32 = arith.constant 0 : index
      %50 = vector.load %arg18[%c0_31, %c0_32] : memref<16x128xbf16, #tpu.memory_space<vmem>>, vector<16x128xbf16>
      tpu.vector_store %arg18[%c0_31, %c0_32], %49 {strides = array<i32>} : memref<16x128xbf16, #tpu.memory_space<vmem>>, vector<16x128xbf16>,
      %c0_33 = arith.constant 0 : index
      %c0_34 = arith.constant 0 : index
      %51 = vector.load %arg17[%c0_33, %c0_34] : memref<16x128xf32, #tpu.memory_space<vmem>>, vector<16x128xf32>
      %c0_35 = arith.constant 0 : index
      %c0_36 = arith.constant 0 : index
      %52 = vector.load %arg19[%c0_35, %c0_36] : memref<16x128xf32, #tpu.memory_space<vmem>>, vector<16x128xf32>
      tpu.vector_store %arg19[%c0_35, %c0_36], %51 {strides = array<i32>} : memref<16x128xf32, #tpu.memory_space<vmem>>, vector<16x128xf32>,
      %c0_i32_37 = arith.constant 0 : i32
      %c24_i32 = arith.constant 24 : i32
      %53 = arith.muli %c0_i32_37, %c24_i32 : i32
      %54 = tpu.assume_multiple %53, 8 : i32
      %55 = arith.index_cast %54 : i32 to index
      %c0_38 = arith.constant 0 : index
      %56 = vector.load %arg2[%55, %c0_38] : memref<24x1xi32, #tpu.memory_space<vmem>>, vector<24x1xi32>
      %57 = arith.index_cast %c0_i32_37 : i32 to index
      %c0_39 = arith.constant 0 : index
      %58 = vector.load %arg3[%57, %c0_39] : memref<1x24xi32, #tpu.memory_space<vmem>>, vector<1x24xi32>
      %59 = vector.broadcast %56 : vector<24x1xi32> to vector<24x16xi32>
      %60 = arith.cmpi eq, %33, %59 : vector<24x16xi32>
      %61 = arith.extui %60 : vector<24x16xi1> to vector<24x16xi32>
      %62 = arith.sitofp %61 : vector<24x16xi32> to vector<24x16xf32>
      %63 = arith.truncf %62 : vector<24x16xf32> to vector<24x16xbf16>
      %64 = vector.broadcast %58 : vector<1x24xi32> to vector<16x24xi32>
      %65 = arith.cmpi eq, %34, %64 : vector<16x24xi32>
      %66 = arith.extui %65 : vector<16x24xi1> to vector<16x24xi32>
      %67 = arith.sitofp %66 : vector<16x24xi32> to vector<16x24xf32>
      %68 = arith.truncf %67 : vector<16x24xf32> to vector<16x24xbf16>
      %c0_40 = arith.constant 0 : index
      %c0_41 = arith.constant 0 : index
      %69 = vector.load %arg18[%c0_40, %c0_41] : memref<16x128xbf16, #tpu.memory_space<vmem>>, vector<16x128xbf16>
      %cst_42 = arith.constant dense<0.000000e+00> : vector<24x128xf32>
      %70 = tpu.matmul %63, %69, %cst_42 {dimension_numbers = #tpu.dot_dimension_numbers<[1], [0], [0], [1], [0, 0, 1, 1], [], []>} : vector<24x16xbf16>, vector<16x128xbf16>, vector<24x128xf32> -> vector<24x128xf32>
      %71 = arith.index_cast %54 : i32 to index
      %c0_43 = arith.constant 0 : index
      %72 = vector.load %arg20[%71, %c0_43] : memref<24x128xbf16, #tpu.memory_space<vmem>>, vector<24x128xbf16>
      %73 = arith.extf %72 : vector<24x128xbf16> to vector<24x128xf32>
      %74 = arith.addf %70, %73 : vector<24x128xf32>
      %cst_44 = arith.constant 0.000000e+00 : f32
      %75 = vector.broadcast %cst_44 : f32 to vector<24x128xf32>
      %76 = arith.maximumf %74, %75 : vector<24x128xf32>
      %77 = arith.truncf %76 : vector<24x128xf32> to vector<24x128xbf16>
      %c0_45 = arith.constant 0 : index
      %c0_46 = arith.constant 0 : index
      %78 = vector.load %arg19[%c0_45, %c0_46] : memref<16x128xf32, #tpu.memory_space<vmem>>, vector<16x128xf32>
      %cst_47 = arith.constant dense<0.000000e+00> : vector<16x128xf32>
      %79 = tpu.matmul %68, %77, %cst_47 {dimension_numbers = #tpu.dot_dimension_numbers<[1], [0], [0], [1], [0, 0, 1, 1], [], []>} : vector<16x24xbf16>, vector<24x128xbf16>, vector<16x128xf32> -> vector<16x128xf32>
      %80 = arith.addf %78, %79 : vector<16x128xf32>
      %c0_48 = arith.constant 0 : index
      %c0_49 = arith.constant 0 : index
      %81 = vector.load %arg19[%c0_48, %c0_49] : memref<16x128xf32, #tpu.memory_space<vmem>>, vector<16x128xf32>
      tpu.vector_store %arg19[%c0_48, %c0_49], %80 {strides = array<i32>} : memref<16x128xf32, #tpu.memory_space<vmem>>, vector<16x128xf32>,
      %c1_i32_50 = arith.constant 1 : i32
      %c0_51 = arith.constant 0 : index
      %c0_52 = arith.constant 0 : index
      %82 = vector.load %arg19[%c0_51, %c0_52] : memref<16x128xf32, #tpu.memory_space<vmem>>, vector<16x128xf32>
      %83 = arith.truncf %82 : vector<16x128xf32> to vector<16x128xbf16>
      %84 = arith.index_cast %arg21 : i32 to index
      %c0_53 = arith.constant 0 : index
      %c0_54 = arith.constant 0 : index
      %85 = vector.load %arg10[%84, %c0_53, %c0_54] : memref<2x128x128xbf16, #tpu.memory_space<vmem>>, vector<1x128x128xbf16>
      %86 = vector.shape_cast %85 : vector<1x128x128xbf16> to vector<128x128xbf16>
      %cst_55 = arith.constant dense<0.000000e+00> : vector<16x128xf32>
      %87 = tpu.matmul %83, %86, %cst_55 {dimension_numbers = #tpu.dot_dimension_numbers<[1], [0], [0], [1], [0, 0, 1, 1], [], []>} : vector<16x128xbf16>, vector<128x128xbf16>, vector<16x128xf32> -> vector<16x128xf32>
      %88 = arith.index_cast %arg21 : i32 to index
      %c0_56 = arith.constant 0 : index
      %c0_57 = arith.constant 0 : index
      %89 = vector.load %arg11[%88, %c0_56, %c0_57] : memref<2x1x128xf32, #tpu.memory_space<vmem>>, vector<1x1x128xf32>
      %90 = vector.shape_cast %89 : vector<1x1x128xf32> to vector<1x128xf32>
      %91 = vector.broadcast %90 : vector<1x128xf32> to vector<16x128xf32>
      %92 = arith.addf %87, %91 : vector<16x128xf32>
      %cst_58 = arith.constant 0.00999999977 : f32
      %93 = vector.broadcast %cst_58 : f32 to vector<16x128xf32>
      %94 = arith.mulf %93, %92 : vector<16x128xf32>
      %95 = arith.maximumf %92, %94 : vector<16x128xf32>
      %96 = arith.truncf %95 : vector<16x128xf32> to vector<16x128xbf16>
      %97 = arith.index_cast %arg21 : i32 to index
      %c0_59 = arith.constant 0 : index
      %c0_60 = arith.constant 0 : index
      %98 = vector.load %arg12[%97, %c0_59, %c0_60] : memref<2x128x128xbf16, #tpu.memory_space<vmem>>, vector<1x128x128xbf16>
      %99 = vector.shape_cast %98 : vector<1x128x128xbf16> to vector<128x128xbf16>
      %cst_61 = arith.constant dense<0.000000e+00> : vector<16x128xf32>
      %100 = tpu.matmul %96, %99, %cst_61 {dimension_numbers = #tpu.dot_dimension_numbers<[1], [0], [0], [1], [0, 0, 1, 1], [], []>} : vector<16x128xbf16>, vector<128x128xbf16>, vector<16x128xf32> -> vector<16x128xf32>
      %101 = arith.index_cast %arg21 : i32 to index
      %c0_62 = arith.constant 0 : index
      %c0_63 = arith.constant 0 : index
      %102 = vector.load %arg13[%101, %c0_62, %c0_63] : memref<2x1x128xf32, #tpu.memory_space<vmem>>, vector<1x1x128xf32>
      %103 = vector.shape_cast %102 : vector<1x1x128xf32> to vector<1x128xf32>
      %104 = vector.broadcast %103 : vector<1x128xf32> to vector<16x128xf32>
      %105 = arith.addf %100, %104 : vector<16x128xf32>
      %cst_64 = arith.constant dense<0.000000e+00> : vector<1x128xf32>
      %106 = tpu.matmul %32, %105, %cst_64 {dimension_numbers = #tpu.dot_dimension_numbers<[1], [0], [0], [1], [0, 0, 1, 1], [], []>} : vector<1x16xf32>, vector<16x128xf32>, vector<1x128xf32> -> vector<1x128xf32>
      %107 = vector.broadcast %106 : vector<1x128xf32> to vector<16x128xf32>
      %108 = arith.subf %105, %107 : vector<16x128xf32>
      %109 = arith.mulf %108, %108 : vector<16x128xf32>
      %cst_65 = arith.constant dense<0.000000e+00> : vector<1x128xf32>
      %110 = tpu.matmul %32, %109, %cst_65 {dimension_numbers = #tpu.dot_dimension_numbers<[1], [0], [0], [1], [0, 0, 1, 1], [], []>} : vector<1x16xf32>, vector<16x128xf32>, vector<1x128xf32> -> vector<1x128xf32>
      %111 = arith.index_cast %arg21 : i32 to index
      %c0_66 = arith.constant 0 : index
      %c0_67 = arith.constant 0 : index
      %112 = vector.load %arg14[%111, %c0_66, %c0_67] : memref<2x1x128xf32, #tpu.memory_space<vmem>>, vector<1x1x128xf32>
      %113 = vector.shape_cast %112 : vector<1x1x128xf32> to vector<1x128xf32>
      %cst_68 = arith.constant 9.99999974E-6 : f32
      %114 = vector.broadcast %cst_68 : f32 to vector<1x128xf32>
      %115 = arith.addf %110, %114 : vector<1x128xf32>
      %116 = math.rsqrt %115 : vector<1x128xf32>
      %117 = arith.mulf %113, %116 : vector<1x128xf32>
      %118 = vector.broadcast %117 : vector<1x128xf32> to vector<16x128xf32>
      %119 = arith.mulf %108, %118 : vector<16x128xf32>
      %120 = arith.index_cast %arg21 : i32 to index
      %c0_69 = arith.constant 0 : index
      %c0_70 = arith.constant 0 : index
      %121 = vector.load %arg15[%120, %c0_69, %c0_70] : memref<2x1x128xf32, #tpu.memory_space<vmem>>, vector<1x1x128xf32>
      %122 = vector.shape_cast %121 : vector<1x1x128xf32> to vector<1x128xf32>
      %123 = vector.broadcast %122 : vector<1x128xf32> to vector<16x128xf32>
      %124 = arith.addf %119, %123 : vector<16x128xf32>
      %125 = vector.broadcast %22 : vector<16x1xf32> to vector<16x128xf32>
      %126 = arith.mulf %124, %125 : vector<16x128xf32>
      %c0_71 = arith.constant 0 : index
      %c0_72 = arith.constant 0 : index
      %127 = vector.load %arg17[%c0_71, %c0_72] : memref<16x128xf32, #tpu.memory_space<vmem>>, vector<16x128xf32>
      tpu.vector_store %arg17[%c0_71, %c0_72], %126 {strides = array<i32>} : memref<16x128xf32, #tpu.memory_space<vmem>>, vector<16x128xf32>,
    }
    %c2_i32_19 = arith.constant 2 : i32
    %c0_20 = arith.constant 0 : index
    %c0_21 = arith.constant 0 : index
    %36 = vector.load %arg5[%c0_20, %c0_21] : memref<2x16xf32, #tpu.memory_space<vmem>>, vector<2x16xf32>
    %c0_22 = arith.constant 0 : index
    %c0_23 = arith.constant 0 : index
    %37 = vector.load %arg17[%c0_22, %c0_23] : memref<16x128xf32, #tpu.memory_space<vmem>>, vector<16x128xf32>
    %cst_24 = arith.constant dense<0.000000e+00> : vector<2x128xf32>
    %38 = tpu.matmul %36, %37, %cst_24 {dimension_numbers = #tpu.dot_dimension_numbers<[1], [0], [0], [1], [0, 0, 1, 1], [], []>} : vector<2x16xf32>, vector<16x128xf32>, vector<2x128xf32> -> vector<2x128xf32>
    %39 = arith.mulf %38, %38 : vector<2x128xf32>
    %cst_25 = arith.constant dense<0.000000e+00> : vector<2xf32>
    %40 = vector.multi_reduction <add>, %39, %cst_25 [1] : vector<2x128xf32> to vector<2xf32>
    %41 = vector.shape_cast %40 : vector<2xf32> to vector<2x1xf32>
    %cst_26 = arith.constant 1.000000e-24 : f32
    %42 = vector.broadcast %cst_26 : f32 to vector<2x1xf32>
    %43 = arith.maximumf %41, %42 : vector<2x1xf32>
    %44 = math.rsqrt %43 : vector<2x1xf32>
    %45 = vector.broadcast %44 : vector<2x1xf32> to vector<2x128xf32>
    %46 = arith.mulf %38, %45 : vector<2x128xf32>
    %c0_27 = arith.constant 0 : index
    %c0_28 = arith.constant 0 : index
    %47 = vector.load %arg16[%c0_27, %c0_28] : memref<2x128xf32, #tpu.memory_space<vmem>>, vector<2x128xf32>
    tpu.vector_store %arg16[%c0_27, %c0_28], %46 {strides = array<i32>} : memref<2x128xf32, #tpu.memory_space<vmem>>, vector<2x128xf32>,
    return
  }
}

</mosaic_0001>

<llo_original>
// kernel: tpu_custom_call.1
$region0: #{tpu_custom_call.1}
  #allocation0 [shape = 'u32[]', space=smem, size = 0x4, offset = 0x4, fixed_abs, tag = 'smem constant byte address 0x4 - core index']
  #allocation1 [shape = 'u32[144,128]{1,0:T(1,128)}', space=vmem, size = 0x12000, scoped, tag = 'internal scratch']
  #allocation2 [shape = 'f32[16,128]{1,0:T(8,128)}', space=vmem, size = 0x2000, scoped, tag = 'scratch operand']
  #allocation3 [shape = 'bf16[16,128]{1,0:T(16,128)(2,1)}', space=vmem, size = 0x1000, scoped, tag = 'scratch operand']
  #allocation4 [shape = 'f32[16,128]{1,0:T(8,128)}', space=vmem, size = 0x2000, scoped, tag = 'scratch operand']
  #allocation5 [shape = 'bf16[24,128]{1,0:T(8,128)(2,1)}', space=vmem, size = 0x1800, scoped, tag = 'scratch operand']
  #allocation6 [shape = 's32[1]{0:T(128)S(6)}', space=smem, size = 0x200, scoped, tag = 'scoped memory for tpu_custom_call.1']
  %s0 = inlined_call_operand.vmem [shape: f32[16,8], index: 0, kind: input, shape index: {}]
  %s1 = inlined_call_operand.vmem [shape: f32[24,8], index: 1, kind: input, shape index: {}]
  %s2 = inlined_call_operand.vmem [shape: s32[24,1], index: 2, kind: input, shape index: {}]
  %s3 = inlined_call_operand.vmem [shape: s32[1,24], index: 3, kind: input, shape index: {}]
  %s4 = inlined_call_operand.<no memory space> [shape: s32[1], index: 4, kind: input, shape index: {}]
  %s5 = inlined_call_operand.vmem [shape: f32[2,16], index: 5, kind: input, shape index: {}]
  %s6 = inlined_call_operand.vmem [shape: bf16[8,128], index: 6, kind: input, shape index: {}]
  %s7 = inlined_call_operand.vmem [shape: f32[1,128], index: 7, kind: input, shape index: {}]
  %s8 = inlined_call_operand.vmem [shape: bf16[8,128], index: 8, kind: input, shape index: {}]
  %s9 = inlined_call_operand.vmem [shape: f32[1,128], index: 9, kind: input, shape index: {}]
  %s10 = inlined_call_operand.hbm [shape: bf16[2,128,128], index: 10, kind: input, shape index: {}]
  %s11 = inlined_call_operand.vmem [shape: f32[2,1,128], index: 11, kind: input, shape index: {}]
  %s12 = inlined_call_operand.hbm [shape: bf16[2,128,128], index: 12, kind: input, shape index: {}]
  %s13 = inlined_call_operand.vmem [shape: f32[2,1,128], index: 13, kind: input, shape index: {}]
  %s14 = inlined_call_operand.vmem [shape: f32[2,1,128], index: 14, kind: input, shape index: {}]
  %s15 = inlined_call_operand.vmem [shape: f32[2,1,128], index: 15, kind: input, shape index: {}]
  %s16 = inlined_call_operand.hbm [shape: f32[2,128], index: 16, kind: output, shape index: {}]
  %s17 = sld [smem:[#allocation0]]
  $region89: #{tpu_custom_call.1} parent=0
    _
  %s19 = ssub.s32 1, %s17
  %s20 = scalar_select 0, %s19, %s17
  %21 = sst [smem:[#allocation6]] %s4
  $region1: #{tpu_custom_call.1} parent=0
    #allocation7 [shape = 'u8[65536]{0}', space=vmem, size = 0x10000, scoped, tag = 'input window, operand 10, single buffered']
    #allocation8 [shape = 's32[1]{0}', space=sflag, size = 0x4, scoped, tag = 'scoped memory for tpu_custom_call.1']
    #allocation9 [shape = 's32[1]{0}', space=sflag, size = 0x4, scoped, tag = 'scoped memory for tpu_custom_call.1']
    #allocation10 [shape = 'u8[65536]{0}', space=vmem, size = 0x10000, scoped, tag = 'input window, operand 12, single buffered']
    #allocation11 [shape = 's32[1]{0}', space=sflag, size = 0x4, scoped, tag = 'scoped memory for tpu_custom_call.1']
    #allocation12 [shape = 'u8[1024]{0}', space=vmem, size = 0x400, scoped, tag = 'output window, operand 0, single buffered']
    %22 = vsyncpa [#allocation8], 0
    %23 = vsyncpa [#allocation11], 0
    %24 = vsyncpa [#allocation9], 0
    // Predicated region
    $region2: #{tpu_custom_call.1} parent=1 // pred_check
      _
    $region3: #{tpu_custom_call.1} parent=1 // pred_check_branch
      %26 = sbr.rel (0) target = $region5
    $region4: #{tpu_custom_call.1} parent=1 // pred_region
      _
    $region5: #{tpu_custom_call.1} parent=1 // pred_fallthru
      _
    // Predicated region
    $region6: #{tpu_custom_call.1} parent=1 // pred_check
      _
    $region7: #{tpu_custom_call.1} parent=1 // pred_check_branch
      %28 = sbr.rel (0) target = $region9
    $region8: #{tpu_custom_call.1} parent=1 // pred_region
      _
    $region9: #{tpu_custom_call.1} parent=1 // pred_fallthru
      _
    // Predicated region
    $region10: #{tpu_custom_call.1} parent=1 // pred_check
      _
    $region11: #{tpu_custom_call.1} parent=1 // pred_check_branch
      %30 = sbr.rel (0) target = $region13
    $region12: #{tpu_custom_call.1} parent=1 // pred_region
      _
    $region13: #{tpu_custom_call.1} parent=1 // pred_fallthru
      _
    // Predicated region
    $region14: #{tpu_custom_call.1} parent=1 // pred_check
      _
    $region15: #{tpu_custom_call.1} parent=1 // pred_check_branch
      %32 = sbr.rel (0) target = $region17
    $region16: #{tpu_custom_call.1} parent=1 // pred_region
      _
    $region17: #{tpu_custom_call.1} parent=1 // pred_fallthru
      _
    // Predicated region
    $region18: #{tpu_custom_call.1} parent=1 // pred_check
      _
    $region19: #{tpu_custom_call.1} parent=1 // pred_check_branch
      %34 = sbr.rel (0) target = $region21
    $region20: #{tpu_custom_call.1} parent=1 // pred_region
      _
    $region21: #{tpu_custom_call.1} parent=1 // pred_fallthru
      _
    // Predicated region
    $region22: #{tpu_custom_call.1} parent=1 // pred_check
      _
    $region23: #{tpu_custom_call.1} parent=1 // pred_check_branch
      %36 = sbr.rel (0) target = $region25
    $region24: #{tpu_custom_call.1} parent=1 // pred_region
      _
    $region25: #{tpu_custom_call.1} parent=1 // pred_fallthru
      _
    // Predicated region
    $region26: #{tpu_custom_call.1} parent=1 // pred_check
      _
    $region27: #{tpu_custom_call.1} parent=1 // pred_check_branch
      %38 = sbr.rel (0) target = $region29
    $region28: #{tpu_custom_call.1} parent=1 // pred_region
      _
    $region29: #{tpu_custom_call.1} parent=1 // pred_fallthru
      _
    // Predicated region
    $region30: #{tpu_custom_call.1} parent=1 // pred_check
      _
    $region31: #{tpu_custom_call.1} parent=1 // pred_check_branch
      %40 = sbr.rel (0) target = $region33
    $region32: #{tpu_custom_call.1} parent=1 // pred_region
      _
    $region33: #{tpu_custom_call.1} parent=1 // pred_fallthru
      _
    // Predicated region
    $region34: #{tpu_custom_call.1} parent=1 // pred_check
      _
    $region35: #{tpu_custom_call.1} parent=1 // pred_check_branch
      %42 = sbr.rel (0) target = $region37
    $region36: #{tpu_custom_call.1} parent=1 // pred_region
      _
    $region37: #{tpu_custom_call.1} parent=1 // pred_fallthru
      _
    // Predicated region
    $region38: #{tpu_custom_call.1} parent=1 // pred_check
      _
    $region39: #{tpu_custom_call.1} parent=1 // pred_check_branch
      %44 = sbr.rel (0) target = $region41
    $region40: #{tpu_custom_call.1} parent=1 // pred_region
      _
    $region41: #{tpu_custom_call.1} parent=1 // pred_fallthru
      _
    // Predicated region
    $region42: #{tpu_custom_call.1} parent=1 // pred_check
      _
    $region43: #{tpu_custom_call.1} parent=1 // pred_check_branch
      %46 = sbr.rel (0) target = $region45
    $region44: #{tpu_custom_call.1} parent=1 // pred_region
      %s48 = ssub.s32 2048, 2048
      %49 = vsyncadd [#allocation8], %s48
      %s50 = sshll.u32 [#allocation7], 4
      %s51 = int_to_ptr.vmem [resolvable:$true] %s50
      %56 = dma.hbm_to_vmem [thread:$0]  %s10, 2048, %s51, [#allocation8], 64, 64, 4
    $region45: #{tpu_custom_call.1} parent=1 // pred_fallthru
      _
    // Predicated region
    $region46: #{tpu_custom_call.1} parent=1 // pred_check
      _
    $region47: #{tpu_custom_call.1} parent=1 // pred_check_branch
      %58 = sbr.rel (0) target = $region49
    $region48: #{tpu_custom_call.1} parent=1 // pred_region
      _
    $region49: #{tpu_custom_call.1} parent=1 // pred_fallthru
      _
    // Predicated region
    $region50: #{tpu_custom_call.1} parent=1 // pred_check
      _
    $region51: #{tpu_custom_call.1} parent=1 // pred_check_branch
      %60 = sbr.rel (0) target = $region53
    $region52: #{tpu_custom_call.1} parent=1 // pred_region
      %s62 = ssub.s32 2048, 2048
      %63 = vsyncadd [#allocation11], %s62
      %s64 = sshll.u32 [#allocation10], 4
      %s65 = int_to_ptr.vmem [resolvable:$true] %s64
      %70 = dma.hbm_to_vmem [thread:$0]  %s12, 2048, %s65, [#allocation11], 64, 64, 4
    $region53: #{tpu_custom_call.1} parent=1 // pred_fallthru
      _
    // Predicated region
    $region54: #{tpu_custom_call.1} parent=1 // pred_check
      _
    $region55: #{tpu_custom_call.1} parent=1 // pred_check_branch
      %72 = sbr.rel (0) target = $region57
    $region56: #{tpu_custom_call.1} parent=1 // pred_region
      _
    $region57: #{tpu_custom_call.1} parent=1 // pred_fallthru
      _
    // Predicated region
    $region58: #{tpu_custom_call.1} parent=1 // pred_check
      _
    $region59: #{tpu_custom_call.1} parent=1 // pred_check_branch
      %74 = sbr.rel (0) target = $region61
    $region60: #{tpu_custom_call.1} parent=1 // pred_region
      _
    $region61: #{tpu_custom_call.1} parent=1 // pred_fallthru
      _
    // Predicated region
    $region62: #{tpu_custom_call.1} parent=1 // pred_check
      _
    $region63: #{tpu_custom_call.1} parent=1 // pred_check_branch
      %76 = sbr.rel (0) target = $region65
    $region64: #{tpu_custom_call.1} parent=1 // pred_region
      _
    $region65: #{tpu_custom_call.1} parent=1 // pred_fallthru
      _
    // Predicated region
    $region66: #{tpu_custom_call.1} parent=1 // pred_check
      _
    $region67: #{tpu_custom_call.1} parent=1 // pred_check_branch
      %78 = sbr.rel (0) target = $region69
    $region68: #{tpu_custom_call.1} parent=1 // pred_region
      %79 = dma.done [#allocation8], 2048
    $region69: #{tpu_custom_call.1} parent=1 // pred_fallthru
      _
    // Predicated region
    $region70: #{tpu_custom_call.1} parent=1 // pred_check
      _
    $region71: #{tpu_custom_call.1} parent=1 // pred_check_branch
      %81 = sbr.rel (0) target = $region73
    $region72: #{tpu_custom_call.1} parent=1 // pred_region
      %82 = dma.done [#allocation11], 2048
    $region73: #{tpu_custom_call.1} parent=1 // pred_fallthru
      _
    %s84 = sld [smem:[#allocation6]]
    %v85 = vld [vmem:[%s0] sm:$0xff]
    %v86 = vld [vmem:[%s0 + $0x8] sm:$0xff]
    %v87 = vpack.c.bf16 %v86, %v85
    %v88 = vld [vmem:[%s6] sm:$0xf]
    %v89 = vld [vmem:[%s7] sm:$0x1]
    %v91 = vlaneseq
    %v92 = vshrl.u32 %v91, 7
    %v93 = vsub.s32 0, %v92
    %v94 = vrot.slane %v89, %v93
    %vm96 = vcmask 64512
    %v98 = vsel %vm96, %v87, 0
    %vm100 = vcmask 1043456
    %v102 = vsel %vm100, %v88, 0
    %104 = vmatprep.subr.bf16.mxu0 0
    %105 = vmatpush1.bf16.msra.mxu0 %v102
    %106 = vmatprep.subr.bf16.mxu0 0
    %107 = vmatpush1.bf16.msra.mxu0 0
    %108 = vmatprep.subr.bf16.mxu0 0
    %109 = vmatpush1.bf16.msra.mxu0 0
    %110 = vmatprep.subr.bf16.mxu0 0
    %111 = vmatpush1.bf16.msra.mxu0 0
    %112 = vmatprep.subr.bf16.mxu0 0
    %113 = vmatpush1.bf16.msra.mxu0 0
    %114 = vmatprep.subr.bf16.mxu0 0
    %115 = vmatpush1.bf16.msra.mxu0 0
    %116 = vmatprep.subr.bf16.mxu0 0
    %117 = vmatpush1.bf16.msra.mxu0 0
    %118 = vmatprep.subr.bf16.mxu0 0
    %119 = vmatpush1.bf16.msra.mxu0 0
    %120 = vmatprep.subr.bf16.mxu0 0
    %121 = vmatpush1.bf16.msra.mxu0 0
    %122 = vmatprep.subr.bf16.mxu0 0
    %123 = vmatpush1.bf16.msra.mxu0 0
    %124 = vmatprep.subr.bf16.mxu0 0
    %125 = vmatpush1.bf16.msra.mxu0 0
    %126 = vmatprep.subr.bf16.mxu0 0
    %127 = vmatpush1.bf16.msra.mxu0 0
    %128 = vmatprep.subr.bf16.mxu0 0
    %129 = vmatpush1.bf16.msra.mxu0 0
    %130 = vmatprep.subr.bf16.mxu0 0
    %131 = vmatpush1.bf16.msra.mxu0 0
    %132 = vmatprep.subr.bf16.mxu0 0
    %133 = vmatpush1.bf16.msra.mxu0 0
    %134 = vmatprep.subr.bf16.mxu0 0
    %135 = vmatpush1.bf16.msra.mxu0 0
    %136 = vmatprep.mubr.bf16.mxu0 0
    %137 = vmatmul.mubr.bf16.gmra.mrb[0].mxu0 %v98
    %v138 = vpop.f32.mrb[0].mxu0
    %v139 = vadd.f32 %v94, %v138
    %v140 = vpop.f32.mrb[0].mxu0
    %v141 = vpop.f32.mrb[0].mxu0
    %v142 = vadd.f32 %v94, %v141
    %v143 = vpop.f32.mrb[0].mxu0
    %144 = vdwg.mxu0
    %145 = vst [vmem:[#allocation2] sm:$0xff] %v139
    %146 = vst [vmem:[#allocation2 + $0x8] sm:$0xff] %v142
    %v147 = vld [vmem:[%s1] sm:$0xff]
    %v148 = vld [vmem:[%s1 + $0x8] sm:$0xff]
    %v149 = vld [vmem:[%s1 + $0x10] sm:$0xff]
    %v150 = vpack.c.bf16 %v148, %v147
    %v151 = vpack.c.bf16 %v149, %v149
    %v152 = vld [vmem:[%s8] sm:$0xf]
    %v153 = vld [vmem:[%s9] sm:$0x1]
    %v155 = vlaneseq
    %v156 = vshrl.u32 %v155, 7
    %v157 = vsub.s32 0, %v156
    %v158 = vrot.slane %v153, %v157
    %v161 = vsel %vm96, %v150, 0
    %v164 = vsel %vm96, %v151, 0
    %v167 = vsel %vm100, %v152, 0
    %169 = vmatprep.subr.bf16.mxu0 0
    %170 = vmatpush1.bf16.msra.mxu0 %v167
    %171 = vmatprep.subr.bf16.mxu0 0
    %172 = vmatpush1.bf16.msra.mxu0 0
    %173 = vmatprep.subr.bf16.mxu0 0
    %174 = vmatpush1.bf16.msra.mxu0 0
    %175 = vmatprep.subr.bf16.mxu0 0
    %176 = vmatpush1.bf16.msra.mxu0 0
    %177 = vmatprep.subr.bf16.mxu0 0
    %178 = vmatpush1.bf16.msra.mxu0 0
    %179 = vmatprep.subr.bf16.mxu0 0
    %180 = vmatpush1.bf16.msra.mxu0 0
    %181 = vmatprep.subr.bf16.mxu0 0
    %182 = vmatpush1.bf16.msra.mxu0 0
    %183 = vmatprep.subr.bf16.mxu0 0
    %184 = vmatpush1.bf16.msra.mxu0 0
    %185 = vmatprep.subr.bf16.mxu0 0
    %186 = vmatpush1.bf16.msra.mxu0 0
    %187 = vmatprep.subr.bf16.mxu0 0
    %188 = vmatpush1.bf16.msra.mxu0 0
    %189 = vmatprep.subr.bf16.mxu0 0
    %190 = vmatpush1.bf16.msra.mxu0 0
    %191 = vmatprep.subr.bf16.mxu0 0
    %192 = vmatpush1.bf16.msra.mxu0 0
    %193 = vmatprep.subr.bf16.mxu0 0
    %194 = vmatpush1.bf16.msra.mxu0 0
    %195 = vmatprep.subr.bf16.mxu0 0
    %196 = vmatpush1.bf16.msra.mxu0 0
    %197 = vmatprep.subr.bf16.mxu0 0
    %198 = vmatpush1.bf16.msra.mxu0 0
    %199 = vmatprep.subr.bf16.mxu0 0
    %200 = vmatpush1.bf16.msra.mxu0 0
    %201 = vmatprep.mubr.bf16.mxu0 0
    %202 = vmatmul.mubr.bf16.gmra.mrb[0].mxu0 %v161
    %v203 = vpop.f32.mrb[0].mxu0
    %v204 = vadd.f32 %v158, %v203
    %v205 = vpop.f32.mrb[0].mxu0
    %v206 = vpop.f32.mrb[0].mxu0
    %v207 = vadd.f32 %v158, %v206
    %v208 = vpop.f32.mrb[0].mxu0
    %209 = vmatprep.mubr.bf16.mxu0 0
    %210 = vmatmul.mubr.bf16.gmra.mrb[0].mxu0 %v164
    %v211 = vpop.f32.mrb[0].mxu0
    %v212 = vadd.f32 %v158, %v211
    %v213 = vpop.f32.mrb[0].mxu0
    %v214 = vpop.f32.mrb[0].mxu0
    %v215 = vpop.f32.mrb[0].mxu0
    %216 = vdwg.mxu0
    %v217 = vpack.c.bf16 %v207, %v204
    %v218 = vpack.c.bf16 %v212, %v212
    %v221 = vunpack.c.l.b16 %v217
    %v222 = vunpack.c.h.b16 %v217
    %v223 = vunpack.c.l.b16 %v218
    %v224 = vpack.c.b16 %v221, %v221
    %v225 = vpack.c.b16 %v222, %v222
    %v226 = vpack.c.b16 %v223, %v223
    %230 = vst [vmem:[#allocation5] sm:$0xf] %v224
    %231 = vst [vmem:[#allocation5 + $0x4] sm:$0xf] %v225
    %232 = vst [vmem:[#allocation5 + $0x8] sm:$0xf] %v226
    %v233 = vlaneseq
    %v234 = vshrl.u32 %v233, 7
    %v235 = vadd.s32 %v234, 8
    %v236 = vstv %s84
    %vm237 = vcmp.lt.s32.totalorder %v234, %v236
    %vm238 = vcmp.lt.s32.totalorder %v235, %v236
    %v239 = vsel %vm237, 1, 0
    %v240 = vsel %vm238, 1, 0
    %v241 = vcvt.s32.f32 %v239
    %v242 = vcvt.s32.f32 %v240
    %p243 = scmp.gt.s32.totalorder %s84, 1
    %s244 = scalar_select %p243, %s84, 1
    %s245 = scvt.s32.f32 %s244
    %v246 = vstv %s245
    %v247 = vrcp.pop %v246
    %s248 = vtos %v247
    %v249 = vlaneseq
    %v250 = vand.u32 %v249, 127
    %vm251 = vcmp.lt.s32.totalorder %v250, %v236
    %v252 = vsel %vm251, 1, 0
    %v253 = vcvt.s32.f32 %v252
    %v254 = vstv %s248
    %v255 = vmul.f32 %v253, %v254
    loop: start=0, step=1, limit=2
    $region74: #{tpu_custom_call.1} parent=1 // loop_pre_header
      _
    $region75: #{tpu_custom_call.1} parent=1 // loop_header
      %s257 = sphi 0, %s261
      %p258 = scmp.ge.s32.totalorder %s257, 2
    $region76: #{tpu_custom_call.1} parent=1 // loop_header_branch
      %260 = sbr.rel (%p258) target = $region80
    $region77: #{tpu_custom_call.1} parent=1 // loop_body
      %v262 = vld [vmem:[#allocation2] sm:$0xff]
      %v263 = vld [vmem:[#allocation2 + $0x8] sm:$0xff]
      %v264 = vpack.c.bf16 %v263, %v262
      %265 = vst [vmem:[#allocation3] sm:$0xff] %v264
      %v266 = vld [vmem:[#allocation2] sm:$0xff]
      %v267 = vld [vmem:[#allocation2 + $0x8] sm:$0xff]
      %268 = vst [vmem:[#allocation4] sm:$0xff] %v266
      %269 = vst [vmem:[#allocation4 + $0x8] sm:$0xff] %v267
      %v270 = vld [vmem:[%s2] sm:$0xff]
      %v271 = vld [vmem:[%s2 + $0x8] sm:$0xff]
      %v272 = vld [vmem:[%s2 + $0x10] sm:$0xff]
      %v273 = vld [vmem:[%s3] sm:$0x1]
      %274 = vset.pattern.permute.xlu0 0
      %275 = vperm.xlu0 %274, %v270
      %v276 = vpop.permute.xlu0 %275
      %277 = vset.pattern.permute.xlu0 0
      %278 = vperm.xlu0 %277, %v271
      %v279 = vpop.permute.xlu0 %278
      %280 = vset.pattern.permute.xlu0 0
      %281 = vperm.xlu0 %280, %v272
      %v282 = vpop.permute.xlu0 %281
      %vm283 = vcmp.eq.s32.totalorder %v250, %v276
      %vm284 = vcmp.eq.s32.totalorder %v250, %v279
      %vm285 = vcmp.eq.s32.totalorder %v250, %v282
      %v286 = vsel %vm283, 1, 0
      %v287 = vsel %vm284, 1, 0
      %v288 = vsel %vm285, 1, 0
      %v289 = vcvt.s32.f32 %v286
      %v290 = vcvt.s32.f32 %v287
      %v291 = vcvt.s32.f32 %v288
      %v292 = vpack.c.bf16 %v290, %v289
      %v293 = vpack.c.bf16 %v291, %v291
      %v294 = vlaneseq
      %v295 = vshrl.u32 %v294, 7
      %v296 = vsub.s32 0, %v295
      %v297 = vrot.slane %v273, %v296
      %vm298 = vcmp.eq.s32.totalorder %v234, %v297
      %vm299 = vcmp.eq.s32.totalorder %v235, %v297
      %v300 = vsel %vm298, 1, 0
      %v301 = vsel %vm299, 1, 0
      %v302 = vcvt.s32.f32 %v300
      %v303 = vcvt.s32.f32 %v301
      %v304 = vpack.c.bf16 %v303, %v302
      %v305 = vld [vmem:[#allocation3] sm:$0xff]
      %v306 = vld [vmem:[#allocation5] sm:$0xf]
      %v307 = vld [vmem:[#allocation5 + $0x4] sm:$0xf]
      %v308 = vld [vmem:[#allocation5 + $0x8] sm:$0xf]
      %v309 = vunpack.c.l.bf16 %v306
      %v310 = vunpack.c.l.bf16 %v307
      %v311 = vunpack.c.l.bf16 %v308
      %vm312 = vcmask 130048
      %v314 = vsel %vm312, %v292, 0
      %v317 = vsel %vm312, %v293, 0
      %319 = vmatprep.subr.bf16.mxu0 0
      %320 = vmatpush1.bf16.msra.mxu0 %v305
      %321 = vmatprep.subr.bf16.mxu0 0
      %322 = vmatpush1.bf16.msra.mxu0 0
      %323 = vmatprep.subr.bf16.mxu0 0
      %324 = vmatpush1.bf16.msra.mxu0 0
      %325 = vmatprep.subr.bf16.mxu0 0
      %326 = vmatpush1.bf16.msra.mxu0 0
      %327 = vmatprep.subr.bf16.mxu0 0
      %328 = vmatpush1.bf16.msra.mxu0 0
      %329 = vmatprep.subr.bf16.mxu0 0
      %330 = vmatpush1.bf16.msra.mxu0 0
      %331 = vmatprep.subr.bf16.mxu0 0
      %332 = vmatpush1.bf16.msra.mxu0 0
      %333 = vmatprep.subr.bf16.mxu0 0
      %334 = vmatpush1.bf16.msra.mxu0 0
      %335 = vmatprep.subr.bf16.mxu0 0
      %336 = vmatpush1.bf16.msra.mxu0 0
      %337 = vmatprep.subr.bf16.mxu0 0
      %338 = vmatpush1.bf16.msra.mxu0 0
      %339 = vmatprep.subr.bf16.mxu0 0
      %340 = vmatpush1.bf16.msra.mxu0 0
      %341 = vmatprep.subr.bf16.mxu0 0
      %342 = vmatpush1.bf16.msra.mxu0 0
      %343 = vmatprep.subr.bf16.mxu0 0
      %344 = vmatpush1.bf16.msra.mxu0 0
      %345 = vmatprep.subr.bf16.mxu0 0
      %346 = vmatpush1.bf16.msra.mxu0 0
      %347 = vmatprep.subr.bf16.mxu0 0
      %348 = vmatpush1.bf16.msra.mxu0 0
      %349 = vmatprep.subr.bf16.mxu0 0
      %350 = vmatpush1.bf16.msra.mxu0 0
      %351 = vmatprep.mubr.bf16.mxu0 0
      %352 = vmatmul.mubr.bf16.gmra.mrb[0].mxu0 %v314
      %v353 = vpop.f32.mrb[0].mxu0
      %v354 = vadd.f32 %v309, %v353
      %v355 = vpop.f32.mrb[0].mxu0
      %v356 = vpop.f32.mrb[0].mxu0
      %v357 = vadd.f32 %v310, %v356
      %v358 = vpop.f32.mrb[0].mxu0
      %359 = vmatprep.mubr.bf16.mxu0 0
      %360 = vmatmul.mubr.bf16.gmra.mrb[0].mxu0 %v317
      %v361 = vpop.f32.mrb[0].mxu0
      %v362 = vadd.f32 %v311, %v361
      %v363 = vpop.f32.mrb[0].mxu0
      %v364 = vpop.f32.mrb[0].mxu0
      %v365 = vpop.f32.mrb[0].mxu0
      %366 = vdwg.mxu0
      %v367 = vmax.f32 %v354, 0.0
      %v368 = vmax.f32 %v357, 0.0
      %v369 = vmax.f32 %v362, 0.0
      %v370 = vpack.c.bf16 %v368, %v367
      %v371 = vpack.c.bf16 %v369, %v369
      %v372 = vld [vmem:[#allocation4] sm:$0xff]
      %v373 = vld [vmem:[#allocation4 + $0x8] sm:$0xff]
      %vm374 = vcmask 195584
      %v376 = vsel %vm374, %v304, 0
      %v379 = vsel %vm100, %v371, 0
      %381 = vmatprep.subr.bf16.mxu0 0
      %382 = vmatpush1.bf16.msra.mxu0 %v370
      %383 = vmatprep.subr.bf16.mxu0 0
      %384 = vmatpush1.bf16.msra.mxu0 %v379
      %385 = vmatprep.subr.bf16.mxu0 0
      %386 = vmatpush1.bf16.msra.mxu0 0
      %387 = vmatprep.subr.bf16.mxu0 0
      %388 = vmatpush1.bf16.msra.mxu0 0
      %389 = vmatprep.subr.bf16.mxu0 0
      %390 = vmatpush1.bf16.msra.mxu0 0
      %391 = vmatprep.subr.bf16.mxu0 0
      %392 = vmatpush1.bf16.msra.mxu0 0
      %393 = vmatprep.subr.bf16.mxu0 0
      %394 = vmatpush1.bf16.msra.mxu0 0
      %395 = vmatprep.subr.bf16.mxu0 0
      %396 = vmatpush1.bf16.msra.mxu0 0
      %397 = vmatprep.subr.bf16.mxu0 0
      %398 = vmatpush1.bf16.msra.mxu0 0
      %399 = vmatprep.subr.bf16.mxu0 0
      %400 = vmatpush1.bf16.msra.mxu0 0
      %401 = vmatprep.subr.bf16.mxu0 0
      %402 = vmatpush1.bf16.msra.mxu0 0
      %403 = vmatprep.subr.bf16.mxu0 0
      %404 = vmatpush1.bf16.msra.mxu0 0
      %405 = vmatprep.subr.bf16.mxu0 0
      %406 = vmatpush1.bf16.msra.mxu0 0
      %407 = vmatprep.subr.bf16.mxu0 0
      %408 = vmatpush1.bf16.msra.mxu0 0
      %409 = vmatprep.subr.bf16.mxu0 0
      %410 = vmatpush1.bf16.msra.mxu0 0
      %411 = vmatprep.subr.bf16.mxu0 0
      %412 = vmatpush1.bf16.msra.mxu0 0
      %413 = vmatprep.mubr.bf16.mxu0 0
      %414 = vmatmul.mubr.bf16.gmra.mrb[0].mxu0 %v376
      %v415 = vpop.f32.mrb[0].mxu0
      %v416 = vadd.f32 0.0, %v415
      %v417 = vpop.f32.mrb[0].mxu0
      %v418 = vpop.f32.mrb[0].mxu0
      %v419 = vadd.f32 0.0, %v418
      %v420 = vpop.f32.mrb[0].mxu0
      %421 = vdwg.mxu0
      %v422 = vadd.f32 %v372, %v416
      %v423 = vadd.f32 %v373, %v419
      %424 = vst [vmem:[#allocation4] sm:$0xff] %v422
      %425 = vst [vmem:[#allocation4 + $0x8] sm:$0xff] %v423
      %v426 = vld [vmem:[#allocation4] sm:$0xff]
      %v427 = vld [vmem:[#allocation4 + $0x8] sm:$0xff]
      %v428 = vpack.c.bf16 %v427, %v426
      %s429 = smul.u32 %s257, 16
      %s430 = smul.addr %s429, 4
      %s431 = scalar_lea.vmem [#allocation7], %s430
      %v432 = vld [vmem:[%s431] sm:$0xf]
      %v433 = vld [vmem:[%s431 + $0x4] sm:$0xf]
      %v434 = vld [vmem:[%s431 + $0x8] sm:$0xf]
      %v435 = vld [vmem:[%s431 + $0xc] sm:$0xf]
      %v436 = vld [vmem:[%s431 + $0x10] sm:$0xf]
      %v437 = vld [vmem:[%s431 + $0x14] sm:$0xf]
      %v438 = vld [vmem:[%s431 + $0x18] sm:$0xf]
      %v439 = vld [vmem:[%s431 + $0x1c] sm:$0xf]
      %v440 = vld [vmem:[%s431 + $0x20] sm:$0xf]
      %v441 = vld [vmem:[%s431 + $0x24] sm:$0xf]
      %v442 = vld [vmem:[%s431 + $0x28] sm:$0xf]
      %v443 = vld [vmem:[%s431 + $0x2c] sm:$0xf]
      %v444 = vld [vmem:[%s431 + $0x30] sm:$0xf]
      %v445 = vld [vmem:[%s431 + $0x34] sm:$0xf]
      %v446 = vld [vmem:[%s431 + $0x38] sm:$0xf]
      %v447 = vld [vmem:[%s431 + $0x3c] sm:$0xf]
      %s448 = scalar_lea.vmem %s11, %s257
      %v449 = vld [vmem:[%s448] sm:$0x1]
      %v451 = vlaneseq
      %v452 = vshrl.u32 %v451, 7
      %v453 = vsub.s32 0, %v452
      %v454 = vrot.slane %v449, %v453
      %v472 = vunpack.c.l.b16 %v432
      %v473 = vunpack.c.l.b16 %v433
      %v474 = vunpack.c.l.b16 %v434
      %v475 = vunpack.c.l.b16 %v435
      %v476 = vunpack.c.l.b16 %v436
      %v477 = vunpack.c.l.b16 %v437
      %v478 = vunpack.c.l.b16 %v438
      %v479 = vunpack.c.l.b16 %v439
      %v480 = vunpack.c.l.b16 %v440
      %v481 = vunpack.c.l.b16 %v441
      %v482 = vunpack.c.l.b16 %v442
      %v483 = vunpack.c.l.b16 %v443
      %v484 = vunpack.c.l.b16 %v444
      %v485 = vunpack.c.l.b16 %v445
      %v486 = vunpack.c.l.b16 %v446
      %v487 = vunpack.c.l.b16 %v447
      %v488 = vpack.c.b16 %v473, %v472
      %v489 = vpack.c.b16 %v475, %v474
      %v490 = vpack.c.b16 %v477, %v476
      %v491 = vpack.c.b16 %v479, %v478
      %v492 = vpack.c.b16 %v481, %v480
      %v493 = vpack.c.b16 %v483, %v482
      %v494 = vpack.c.b16 %v485, %v484
      %v495 = vpack.c.b16 %v487, %v486
      %504 = vmatprep.subr.bf16.mxu0 0
      %505 = vmatpush1.bf16.msra.mxu0 %v488
      %506 = vmatprep.subr.bf16.mxu0 0
      %507 = vmatpush1.bf16.msra.mxu0 %v489
      %508 = vmatprep.subr.bf16.mxu0 0
      %509 = vmatpush1.bf16.msra.mxu0 %v490
      %510 = vmatprep.subr.bf16.mxu0 0
      %511 = vmatpush1.bf16.msra.mxu0 %v491
      %512 = vmatprep.subr.bf16.mxu0 0
      %513 = vmatpush1.bf16.msra.mxu0 %v492
      %514 = vmatprep.subr.bf16.mxu0 0
      %515 = vmatpush1.bf16.msra.mxu0 %v493
      %516 = vmatprep.subr.bf16.mxu0 0
      %517 = vmatpush1.bf16.msra.mxu0 %v494
      %518 = vmatprep.subr.bf16.mxu0 0
      %519 = vmatpush1.bf16.msra.mxu0 %v495
      %520 = vmatprep.subr.bf16.mxu0 0
      %521 = vmatpush1.bf16.msra.mxu0 0
      %522 = vmatprep.subr.bf16.mxu0 0
      %523 = vmatpush1.bf16.msra.mxu0 0
      %524 = vmatprep.subr.bf16.mxu0 0
      %525 = vmatpush1.bf16.msra.mxu0 0
      %526 = vmatprep.subr.bf16.mxu0 0
      %527 = vmatpush1.bf16.msra.mxu0 0
      %528 = vmatprep.subr.bf16.mxu0 0
      %529 = vmatpush1.bf16.msra.mxu0 0
      %530 = vmatprep.subr.bf16.mxu0 0
      %531 = vmatpush1.bf16.msra.mxu0 0
      %532 = vmatprep.subr.bf16.mxu0 0
      %533 = vmatpush1.bf16.msra.mxu0 0
      %534 = vmatprep.subr.bf16.mxu0 0
      %535 = vmatpush1.bf16.msra.mxu0 0
      %536 = vmatprep.mubr.bf16.mxu0 0
      %537 = vmatmul.mubr.bf16.gmra.mrb[0].mxu0 %v428
      %v538 = vpop.f32.mrb[0].mxu0
      %v539 = vadd.f32 %v454, %v538
      %v540 = vpop.f32.mrb[0].mxu0
      %v541 = vpop.f32.mrb[0].mxu0
      %v542 = vadd.f32 %v454, %v541
      %v543 = vpop.f32.mrb[0].mxu0
      %544 = vdwg.mxu0
      %v545 = vmul.f32 %v539, 0.01
      %v546 = vmul.f32 %v542, 0.01
      %v547 = vmax.f32 %v539, %v545
      %v548 = vmax.f32 %v542, %v546
      %v549 = vpack.c.bf16 %v548, %v547
      %s550 = smul.addr %s429, 4
      %s551 = scalar_lea.vmem [#allocation10], %s550
      %v552 = vld [vmem:[%s551] sm:$0xf]
      %v553 = vld [vmem:[%s551 + $0x4] sm:$0xf]
      %v554 = vld [vmem:[%s551 + $0x8] sm:$0xf]
      %v555 = vld [vmem:[%s551 + $0xc] sm:$0xf]
      %v556 = vld [vmem:[%s551 + $0x10] sm:$0xf]
      %v557 = vld [vmem:[%s551 + $0x14] sm:$0xf]
      %v558 = vld [vmem:[%s551 + $0x18] sm:$0xf]
      %v559 = vld [vmem:[%s551 + $0x1c] sm:$0xf]
      %v560 = vld [vmem:[%s551 + $0x20] sm:$0xf]
      %v561 = vld [vmem:[%s551 + $0x24] sm:$0xf]
      %v562 = vld [vmem:[%s551 + $0x28] sm:$0xf]
      %v563 = vld [vmem:[%s551 + $0x2c] sm:$0xf]
      %v564 = vld [vmem:[%s551 + $0x30] sm:$0xf]
      %v565 = vld [vmem:[%s551 + $0x34] sm:$0xf]
      %v566 = vld [vmem:[%s551 + $0x38] sm:$0xf]
      %v567 = vld [vmem:[%s551 + $0x3c] sm:$0xf]
      %s568 = scalar_lea.vmem %s13, %s257
      %v569 = vld [vmem:[%s568] sm:$0x1]
      %v571 = vlaneseq
      %v572 = vshrl.u32 %v571, 7
      %v573 = vsub.s32 0, %v572
      %v574 = vrot.slane %v569, %v573
      %v592 = vunpack.c.l.b16 %v552
      %v593 = vunpack.c.l.b16 %v553
      %v594 = vunpack.c.l.b16 %v554
      %v595 = vunpack.c.l.b16 %v555
      %v596 = vunpack.c.l.b16 %v556
      %v597 = vunpack.c.l.b16 %v557
      %v598 = vunpack.c.l.b16 %v558
      %v599 = vunpack.c.l.b16 %v559
      %v600 = vunpack.c.l.b16 %v560
      %v601 = vunpack.c.l.b16 %v561
      %v602 = vunpack.c.l.b16 %v562
      %v603 = vunpack.c.l.b16 %v563
      %v604 = vunpack.c.l.b16 %v564
      %v605 = vunpack.c.l.b16 %v565
      %v606 = vunpack.c.l.b16 %v566
      %v607 = vunpack.c.l.b16 %v567
      %v608 = vpack.c.b16 %v593, %v592
      %v609 = vpack.c.b16 %v595, %v594
      %v610 = vpack.c.b16 %v597, %v596
      %v611 = vpack.c.b16 %v599, %v598
      %v612 = vpack.c.b16 %v601, %v600
      %v613 = vpack.c.b16 %v603, %v602
      %v614 = vpack.c.b16 %v605, %v604
      %v615 = vpack.c.b16 %v607, %v606
      %624 = vmatprep.subr.bf16.mxu0 0
      %625 = vmatpush1.bf16.msra.mxu0 %v608
      %626 = vmatprep.subr.bf16.mxu0 0
      %627 = vmatpush1.bf16.msra.mxu0 %v609
      %628 = vmatprep.subr.bf16.mxu0 0
      %629 = vmatpush1.bf16.msra.mxu0 %v610
      %630 = vmatprep.subr.bf16.mxu0 0
      %631 = vmatpush1.bf16.msra.mxu0 %v611
      %632 = vmatprep.subr.bf16.mxu0 0
      %633 = vmatpush1.bf16.msra.mxu0 %v612
      %634 = vmatprep.subr.bf16.mxu0 0
      %635 = vmatpush1.bf16.msra.mxu0 %v613
      %636 = vmatprep.subr.bf16.mxu0 0
      %637 = vmatpush1.bf16.msra.mxu0 %v614
      %638 = vmatprep.subr.bf16.mxu0 0
      %639 = vmatpush1.bf16.msra.mxu0 %v615
      %640 = vmatprep.subr.bf16.mxu0 0
      %641 = vmatpush1.bf16.msra.mxu0 0
      %642 = vmatprep.subr.bf16.mxu0 0
      %643 = vmatpush1.bf16.msra.mxu0 0
      %644 = vmatprep.subr.bf16.mxu0 0
      %645 = vmatpush1.bf16.msra.mxu0 0
      %646 = vmatprep.subr.bf16.mxu0 0
      %647 = vmatpush1.bf16.msra.mxu0 0
      %648 = vmatprep.subr.bf16.mxu0 0
      %649 = vmatpush1.bf16.msra.mxu0 0
      %650 = vmatprep.subr.bf16.mxu0 0
      %651 = vmatpush1.bf16.msra.mxu0 0
      %652 = vmatprep.subr.bf16.mxu0 0
      %653 = vmatpush1.bf16.msra.mxu0 0
      %654 = vmatprep.subr.bf16.mxu0 0
      %655 = vmatpush1.bf16.msra.mxu0 0
      %656 = vmatprep.mubr.bf16.mxu0 0
      %657 = vmatmul.mubr.bf16.gmra.mrb[0].mxu0 %v549
      %v658 = vpop.f32.mrb[0].mxu0
      %v659 = vadd.f32 %v574, %v658
      %v660 = vpop.f32.mrb[0].mxu0
      %v661 = vpop.f32.mrb[0].mxu0
      %v662 = vadd.f32 %v574, %v661
      %v663 = vpop.f32.mrb[0].mxu0
      %664 = vdwg.mxu0
      %v666 = vsel %vm312, %v255, 0
      %668 = vmatprep.subr.mxu0 0.0
      %669 = vmatpush1.msra.mxu0 %v659
      %670 = vmatprep.subr.mxu0 0.0
      %671 = vmatpush1.msra.mxu0 %v662
      %672 = vmatprep.subr.mxu0 0.0
      %673 = vmatpush1.msra.mxu0 0.0
      %674 = vmatprep.subr.mxu0 0.0
      %675 = vmatpush1.msra.mxu0 0.0
      %676 = vmatprep.subr.mxu0 0.0
      %677 = vmatpush1.msra.mxu0 0.0
      %678 = vmatprep.subr.mxu0 0.0
      %679 = vmatpush1.msra.mxu0 0.0
      %680 = vmatprep.subr.mxu0 0.0
      %681 = vmatpush1.msra.mxu0 0.0
      %682 = vmatprep.subr.mxu0 0.0
      %683 = vmatpush1.msra.mxu0 0.0
      %684 = vmatprep.subr.mxu0 0.0
      %685 = vmatpush1.msra.mxu0 0.0
      %686 = vmatprep.subr.mxu0 0.0
      %687 = vmatpush1.msra.mxu0 0.0
      %688 = vmatprep.subr.mxu0 0.0
      %689 = vmatpush1.msra.mxu0 0.0
      %690 = vmatprep.subr.mxu0 0.0
      %691 = vmatpush1.msra.mxu0 0.0
      %692 = vmatprep.subr.mxu0 0.0
      %693 = vmatpush1.msra.mxu0 0.0
      %694 = vmatprep.subr.mxu0 0.0
      %695 = vmatpush1.msra.mxu0 0.0
      %696 = vmatprep.subr.mxu0 0.0
      %697 = vmatpush1.msra.mxu0 0.0
      %698 = vmatprep.subr.mxu0 0.0
      %699 = vmatpush1.msra.mxu0 0.0
      %700 = vmatprep.subr.mxu0 0.0
      %701 = vmatpush1.msra.mxu0 0.0
      %702 = vmatprep.subr.mxu0 0.0
      %703 = vmatpush1.msra.mxu0 0.0
      %704 = vmatprep.subr.mxu0 0.0
      %705 = vmatpush1.msra.mxu0 0.0
      %706 = vmatprep.subr.mxu0 0.0
      %707 = vmatpush1.msra.mxu0 0.0
      %708 = vmatprep.subr.mxu0 0.0
      %709 = vmatpush1.msra.mxu0 0.0
      %710 = vmatprep.subr.mxu0 0.0
      %711 = vmatpush1.msra.mxu0 0.0
      %712 = vmatprep.subr.mxu0 0.0
      %713 = vmatpush1.msra.mxu0 0.0
      %714 = vmatprep.subr.mxu0 0.0
      %715 = vmatpush1.msra.mxu0 0.0
      %716 = vmatprep.subr.mxu0 0.0
      %717 = vmatpush1.msra.mxu0 0.0
      %718 = vmatprep.subr.mxu0 0.0
      %719 = vmatpush1.msra.mxu0 0.0
      %720 = vmatprep.subr.mxu0 0.0
      %721 = vmatpush1.msra.mxu0 0.0
      %722 = vmatprep.subr.mxu0 0.0
      %723 = vmatpush1.msra.mxu0 0.0
      %724 = vmatprep.subr.mxu0 0.0
      %725 = vmatpush1.msra.mxu0 0.0
      %726 = vmatprep.subr.mxu0 0.0
      %727 = vmatpush1.msra.mxu0 0.0
      %728 = vmatprep.subr.mxu0 0.0
      %729 = vmatpush1.msra.mxu0 0.0
      %730 = vmatprep.subr.mxu0 0.0
      %731 = vmatpush1.msra.mxu0 0.0
      %732 = vmatprep.mubr.f32.mxu0 0.0
      %733 = vmatmul.mubr.f32.gmra.mrb[0].mxu0 %v666
      %v734 = vpop.f32.mrb[0].mxu0
      %v735 = vadd.f32 0.0, %v734
      %v736 = vpop.f32.mrb[0].mxu0
      %737 = vdwg.mxu0
      %v738 = vlaneseq
      %v739 = vshrl.u32 %v738, 7
      %v740 = vsub.s32 0, %v739
      %v741 = vrot.slane %v735, %v740
      %v742 = vsub.f32 %v659, %v741
      %v743 = vsub.f32 %v662, %v741
      %v744 = vmul.f32 %v742, %v742
      %v745 = vmul.f32 %v743, %v743
      %s746 = scalar_lea.vmem %s14, %s257
      %v747 = vld [vmem:[%s746] sm:$0x1]
      %748 = vmatprep.subr.mxu0 0.0
      %749 = vmatpush1.msra.mxu0 %v744
      %750 = vmatprep.subr.mxu0 0.0
      %751 = vmatpush1.msra.mxu0 %v745
      %752 = vmatprep.subr.mxu0 0.0
      %753 = vmatpush1.msra.mxu0 0.0
      %754 = vmatprep.subr.mxu0 0.0
      %755 = vmatpush1.msra.mxu0 0.0
      %756 = vmatprep.subr.mxu0 0.0
      %757 = vmatpush1.msra.mxu0 0.0
      %758 = vmatprep.subr.mxu0 0.0
      %759 = vmatpush1.msra.mxu0 0.0
      %760 = vmatprep.subr.mxu0 0.0
      %761 = vmatpush1.msra.mxu0 0.0
      %762 = vmatprep.subr.mxu0 0.0
      %763 = vmatpush1.msra.mxu0 0.0
      %764 = vmatprep.subr.mxu0 0.0
      %765 = vmatpush1.msra.mxu0 0.0
      %766 = vmatprep.subr.mxu0 0.0
      %767 = vmatpush1.msra.mxu0 0.0
      %768 = vmatprep.subr.mxu0 0.0
      %769 = vmatpush1.msra.mxu0 0.0
      %770 = vmatprep.subr.mxu0 0.0
      %771 = vmatpush1.msra.mxu0 0.0
      %772 = vmatprep.subr.mxu0 0.0
      %773 = vmatpush1.msra.mxu0 0.0
      %774 = vmatprep.subr.mxu0 0.0
      %775 = vmatpush1.msra.mxu0 0.0
      %776 = vmatprep.subr.mxu0 0.0
      %777 = vmatpush1.msra.mxu0 0.0
      %778 = vmatprep.subr.mxu0 0.0
      %779 = vmatpush1.msra.mxu0 0.0
      %780 = vmatprep.subr.mxu0 0.0
      %781 = vmatpush1.msra.mxu0 0.0
      %782 = vmatprep.subr.mxu0 0.0
      %783 = vmatpush1.msra.mxu0 0.0
      %784 = vmatprep.subr.mxu0 0.0
      %785 = vmatpush1.msra.mxu0 0.0
      %786 = vmatprep.subr.mxu0 0.0
      %787 = vmatpush1.msra.mxu0 0.0
      %788 = vmatprep.subr.mxu0 0.0
      %789 = vmatpush1.msra.mxu0 0.0
      %790 = vmatprep.subr.mxu0 0.0
      %791 = vmatpush1.msra.mxu0 0.0
      %792 = vmatprep.subr.mxu0 0.0
      %793 = vmatpush1.msra.mxu0 0.0
      %794 = vmatprep.subr.mxu0 0.0
      %795 = vmatpush1.msra.mxu0 0.0
      %796 = vmatprep.subr.mxu0 0.0
      %797 = vmatpush1.msra.mxu0 0.0
      %798 = vmatprep.subr.mxu0 0.0
      %799 = vmatpush1.msra.mxu0 0.0
      %800 = vmatprep.subr.mxu0 0.0
      %801 = vmatpush1.msra.mxu0 0.0
      %802 = vmatprep.subr.mxu0 0.0
      %803 = vmatpush1.msra.mxu0 0.0
      %804 = vmatprep.subr.mxu0 0.0
      %805 = vmatpush1.msra.mxu0 0.0
      %806 = vmatprep.subr.mxu0 0.0
      %807 = vmatpush1.msra.mxu0 0.0
      %808 = vmatprep.subr.mxu0 0.0
      %809 = vmatpush1.msra.mxu0 0.0
      %810 = vmatprep.subr.mxu0 0.0
      %811 = vmatpush1.msra.mxu0 0.0
      %812 = vmatprep.mubr.f32.mxu0 0.0
      %813 = vmatmul.mubr.f32.gmra.mrb[0].mxu0 %v666
      %v814 = vpop.f32.mrb[0].mxu0
      %v815 = vadd.f32 1e-05, %v814
      %v816 = vpop.f32.mrb[0].mxu0
      %817 = vdwg.mxu0
      %v818 = vrsqrt.pop %v815
      %v819 = vmul.f32 %v747, %v818
      %v821 = vlaneseq
      %v822 = vshrl.u32 %v821, 7
      %v823 = vsub.s32 0, %v822
      %v824 = vrot.slane %v819, %v823
      %v826 = vmul.f32 %v742, %v824
      %v827 = vmul.f32 %v743, %v824
      %s828 = scalar_lea.vmem %s15, %s257
      %v829 = vld [vmem:[%s828] sm:$0x1]
      %v831 = vlaneseq
      %v832 = vshrl.u32 %v831, 7
      %v833 = vsub.s32 0, %v832
      %v834 = vrot.slane %v829, %v833
      %v836 = vadd.f32 %v826, %v834
      %v837 = vadd.f32 %v827, %v834
      %v838 = vmul.f32 %v836, %v241
      %v839 = vmul.f32 %v837, %v242
      %840 = vst [vmem:[#allocation2] sm:$0xff] %v838
      %841 = vst [vmem:[#allocation2 + $0x8] sm:$0xff] %v839
    $region78: #{tpu_custom_call.1} parent=1 // loop_footer
      %s261 = sadd.s32 1, %s257
    $region79: #{tpu_custom_call.1} parent=1 // loop_footer_branch
      %256 = sbr.rel target = $region75
    $region80: #{tpu_custom_call.1} parent=1 // loop_exit
      _
    %v842 = vld [vmem:[%s5] sm:$0x3]
    %v843 = vld [vmem:[#allocation2] sm:$0xff]
    %v844 = vld [vmem:[#allocation2 + $0x8] sm:$0xff]
    %vm845 = vcmask 130048
    %v847 = vsel %vm845, %v842, 0
    %849 = vmatprep.subr.mxu0 0.0
    %850 = vmatpush1.msra.mxu0 %v843
    %851 = vmatprep.subr.mxu0 0.0
    %852 = vmatpush1.msra.mxu0 %v844
    %853 = vmatprep.subr.mxu0 0.0
    %854 = vmatpush1.msra.mxu0 0.0
    %855 = vmatprep.subr.mxu0 0.0
    %856 = vmatpush1.msra.mxu0 0.0
    %857 = vmatprep.subr.mxu0 0.0
    %858 = vmatpush1.msra.mxu0 0.0
    %859 = vmatprep.subr.mxu0 0.0
    %860 = vmatpush1.msra.mxu0 0.0
    %861 = vmatprep.subr.mxu0 0.0
    %862 = vmatpush1.msra.mxu0 0.0
    %863 = vmatprep.subr.mxu0 0.0
    %864 = vmatpush1.msra.mxu0 0.0
    %865 = vmatprep.subr.mxu0 0.0
    %866 = vmatpush1.msra.mxu0 0.0
    %867 = vmatprep.subr.mxu0 0.0
    %868 = vmatpush1.msra.mxu0 0.0
    %869 = vmatprep.subr.mxu0 0.0
    %870 = vmatpush1.msra.mxu0 0.0
    %871 = vmatprep.subr.mxu0 0.0
    %872 = vmatpush1.msra.mxu0 0.0
    %873 = vmatprep.subr.mxu0 0.0
    %874 = vmatpush1.msra.mxu0 0.0
    %875 = vmatprep.subr.mxu0 0.0
    %876 = vmatpush1.msra.mxu0 0.0
    %877 = vmatprep.subr.mxu0 0.0
    %878 = vmatpush1.msra.mxu0 0.0
    %879 = vmatprep.subr.mxu0 0.0
    %880 = vmatpush1.msra.mxu0 0.0
    %881 = vmatprep.subr.mxu0 0.0
    %882 = vmatpush1.msra.mxu0 0.0
    %883 = vmatprep.subr.mxu0 0.0
    %884 = vmatpush1.msra.mxu0 0.0
    %885 = vmatprep.subr.mxu0 0.0
    %886 = vmatpush1.msra.mxu0 0.0
    %887 = vmatprep.subr.mxu0 0.0
    %888 = vmatpush1.msra.mxu0 0.0
    %889 = vmatprep.subr.mxu0 0.0
    %890 = vmatpush1.msra.mxu0 0.0
    %891 = vmatprep.subr.mxu0 0.0
    %892 = vmatpush1.msra.mxu0 0.0
    %893 = vmatprep.subr.mxu0 0.0
    %894 = vmatpush1.msra.mxu0 0.0
    %895 = vmatprep.subr.mxu0 0.0
    %896 = vmatpush1.msra.mxu0 0.0
    %897 = vmatprep.subr.mxu0 0.0
    %898 = vmatpush1.msra.mxu0 0.0
    %899 = vmatprep.subr.mxu0 0.0
    %900 = vmatpush1.msra.mxu0 0.0
    %901 = vmatprep.subr.mxu0 0.0
    %902 = vmatpush1.msra.mxu0 0.0
    %903 = vmatprep.subr.mxu0 0.0
    %904 = vmatpush1.msra.mxu0 0.0
    %905 = vmatprep.subr.mxu0 0.0
    %906 = vmatpush1.msra.mxu0 0.0
    %907 = vmatprep.subr.mxu0 0.0
    %908 = vmatpush1.msra.mxu0 0.0
    %909 = vmatprep.subr.mxu0 0.0
    %910 = vmatpush1.msra.mxu0 0.0
    %911 = vmatprep.subr.mxu0 0.0
    %912 = vmatpush1.msra.mxu0 0.0
    %913 = vmatprep.mubr.f32.mxu0 0.0
    %914 = vmatmul.mubr.f32.gmra.mrb[0].mxu0 %v847
    %v915 = vpop.f32.mrb[0].mxu0
    %v916 = vadd.f32 0.0, %v915
    %v917 = vpop.f32.mrb[0].mxu0
    %918 = vdwg.mxu0
    %v919 = vmul.f32 %v916, %v916
    %vm920 = vcmask 1041408
    %v921 = vsel %vm920, %v919, 0.0
    %922 = vadd.xlane.f32.xlu0 %v921
    %v923 = vpop.xlane.xlu0 %922
    %v924 = vmax.f32 %v923, 1e-24
    %v925 = vrsqrt.pop %v924
    %v926 = vmul.f32 %v916, %v925
    %927 = vst [vmem:[#allocation12] sm:$0x3] %v926
    // Predicated region
    $region81: #{tpu_custom_call.1} parent=1 // pred_check
      _
    $region82: #{tpu_custom_call.1} parent=1 // pred_check_branch
      %929 = sbr.rel (0) target = $region84
    $region83: #{tpu_custom_call.1} parent=1 // pred_region
      %s931 = ssub.s32 32, 32
      %932 = vsyncadd [#allocation9], %s931
      %s934 = sshll.u32 [#allocation12], 4
      %s935 = int_to_ptr.vmem [resolvable:$true] %s934
      %937 = dma.vmem_to_hbm [thread:$0]  %s935, 32, %s16, [#allocation9]
    $region84: #{tpu_custom_call.1} parent=1 // pred_fallthru
      _
    // Predicated region
    $region85: #{tpu_custom_call.1} parent=1 // pred_check
      _
    $region86: #{tpu_custom_call.1} parent=1 // pred_check_branch
      %939 = sbr.rel (0) target = $region88
    $region87: #{tpu_custom_call.1} parent=1 // pred_region
      %940 = dma.done [#allocation9], 32
    $region88: #{tpu_custom_call.1} parent=1 // pred_fallthru
      _
    %941 = vsyncpa [#allocation8], 1
    %942 = vsyncpa [#allocation11], 1
    %943 = vsyncpa [#allocation9], 1

</llo_original>
